<compile_context>
chip_gen: v7x
topology: tpu7x:2x2x1
jax: 0.10.0
libtpu: 0.0.40
codegen_flags: <defaults>
</compile_context>

<pallas_src>
import functools
import math

import jax
import jax.numpy as jnp
from jax import lax
from jax.experimental import pallas as pl
from jax.experimental.pallas import tpu as pltpu


def _round_up(x, n):
    return ((x + n - 1) // n) * n


def _tpu_vmem_capacity():
    # Physical per-core VMEM; fall back to the most restrictive generation (v7x, 64 MiB).
    try:
        return int(pltpu.get_tpu_info().vmem_capacity_bytes)
    except Exception:
        return 64 * 1024 * 1024


def _select_tiles(B, C, D, block_b, block_c, vmem_cap):
    tb = _round_up(min(block_b, _round_up(B, 8)), 8)
    Bp = _round_up(B, tb)
    nb = Bp // tb

    cp128 = _round_up(C, 128)
    # When the whole batch fits in one tile, the batch "parallel" axis gives megacore
    # nothing to split -> add a size-2 class-range split so v7x's 2nd TC does work.
    n_split = 2 if (nb == 1 and cp128 >= 256) else 1

    if block_c is None:
        block_c = 8192 if vmem_cap >= 96 * 1024 * 1024 else 4096
    tc = _round_up(min(block_c, cp128), 128)
    # Need at least n_split class tiles.
    tc = min(tc, _round_up((cp128 + n_split - 1) // n_split, 128))

    # Shrink tc until the worst-case (f32 W stream, f32 e) double-buffered working set
    # fits a conservative slice of physical VMEM.
    budget = int(0.55 * vmem_cap)

    def est_worst(tc_):
        return (2 * tc_ * D * 4          # W windows (worst case f32)
                + 2 * tb * tc_ * 4       # e windows (f32)
                + 2 * tb * D * 4         # x windows
                + 2 * tc_ * 4            # winv windows
                + tb * D * 2             # xn scratch (bf16)
                + 8 * tb * 4)            # labels + denom

    while tc > 128 and est_worst(tc) > budget:
        tc -= 128

    Cp = _round_up(C, tc * n_split)
    return tb, Bp, nb, tc, Cp, n_split


def _arcface_kernel(flags_ref, x_ref, w_ref, winv_ref, label_ref,
                    e_ref, denom_ref, xn_ref, *,
                    s, cos_m, sin_m, apply_margin, block_c, ncps, nct,
                    num_valid_classes, mask_classes):
    sp = pl.program_id(0)   # class-range split ("parallel", feeds v7x 2nd TC)
    i = pl.program_id(1)    # batch tile ("parallel")
    j = pl.program_id(2)    # class tile within split ("arbitrary", innermost)

    # Once per (split, batch tile): normalize x (f32 rsqrt on EUP) into bf16 VMEM
    # scratch and zero the resident per-row softmax-denominator accumulator.
    @pl.when(j == 0)
    def _init():
        x = x_ref[...].astype(jnp.float32)                                   # [tB, D]
        inv = lax.rsqrt(jnp.maximum(jnp.sum(x * x, axis=1, keepdims=True), 1e-24))
        xn_ref[...] = (x * inv).astype(jnp.bfloat16)
        denom_ref[...] = jnp.zeros_like(denom_ref)

    # Raw bf16 matmul (no W normalization in-kernel); contract over D of BOTH operands
    # (the "q @ k.T" pattern Mosaic lowers natively on the MXU - no XLU transpose).
    wn = w_ref[...].astype(jnp.bfloat16)                                     # [tC, D]
    raw = lax.dot_general(xn_ref[...], wn,
                          dimension_numbers=(((1,), (1,)), ((), ())),
                          preferred_element_type=jnp.float32)                # [tB, tC]
    # Scale by precomputed per-class inverse norms -> cosine similarities.
    cos = raw * winv_ref[...]                                                # [tB, tC]

    jg = sp * ncps + j   # global class-tile index
    if apply_margin or mask_classes:
        col = jg * block_c + lax.broadcasted_iota(jnp.int32, cos.shape, 1)

    def _emit(logit):
        # Fixed, provably-maximal shift: |cos| <= 1 => logit <= s.  Shift-invariant,
        # so no online rescaling of already-written tiles is needed.
        e = jnp.exp(logit - s)
        if mask_classes:
            e = jnp.where(col < num_valid_classes, e, 0.0)   # drop padded classes
        e_ref[...] = e.astype(e_ref.dtype)                   # lane-dense [tB, tC] store
        denom_ref[...] += jnp.sum(e, axis=1, keepdims=True)  # resident accumulator

    if apply_margin:
        # Only the (usually single) class tile containing this batch tile's targets
        # pays for the sqrt / margin math.
        has_target = flags_ref[i * nct + jg] > 0

        @pl.when(has_target)
        def _margin():
            sin = jnp.clip(jnp.sqrt(jnp.maximum(1.0 - cos * cos, 0.0)), 1e-7, 1.0)
            cos_theta = cos * cos_m - sin * sin_m
            # TODO(synk): no easy-margin / (theta + m > pi) guard -- the reference
            # PyTorch module does not have one either.
            logit = jnp.where(col == label_ref[...], cos_theta, cos) * s
            _emit(logit)

        @pl.when(jnp.logical_not(has_target))
        def _plain():
            _emit(cos * s)
    else:
        _emit(cos * s)


def arcface_forward(embed_vector, W, label=None, m=0.5, s=30.0, *,
                    block_b=256, block_c=None, out_dtype=jnp.float32):
    """Pallas implementation of ArcFace.forward (returns softmax probabilities)."""
    B, D = embed_vector.shape
    C, D2 = W.shape
    assert D == D2, "feature dims of embed_vector and W must match"

    vmem_cap = _tpu_vmem_capacity()
    tb, Bp, nb, tc, Cp, n_split = _select_tiles(B, C, D, block_b, block_c, vmem_cap)
    ncps = Cp // (tc * n_split)      # class tiles per split
    nct = n_split * ncps             # total class tiles
    mask_classes = (Cp != C)

    # --- Per-class inverse norms, computed ONCE from the stored W (f32 math). ---
    w32 = W.astype(jnp.float32)
    winv = lax.rsqrt(jnp.maximum(jnp.sum(w32 * w32, axis=1), 1e-24))
    if Cp != C:
        winv = jnp.pad(winv, (0, Cp - C))
    winv = winv.reshape(1, Cp)

    # --- W stream: avoid an extra full pass over W when there are few batch tiles and
    #     no class padding; otherwise pre-cast (and pad) to bf16 to halve kernel reads.
    #     The kernel casts to bf16 either way, so numerics are identical. ---
    if (nb >= 3) or (Cp != C):
        w_stream = W.astype(jnp.bfloat16)
        if Cp != C:
            w_stream = jnp.pad(w_stream, ((0, Cp - C), (0, 0)))
    else:
        w_stream = W   # streamed in stored dtype, cast to bf16 in-kernel

    x = embed_vector
    if Bp != B:
        x = jnp.pad(x, ((0, Bp - B), (0, 0)))

    if label is None:
        apply_margin = False
        lbl = jnp.full((Bp, 1), -1, dtype=jnp.int32)           # never matches
        flags = jnp.zeros((nb * nct,), jnp.int32)
    else:
        apply_margin = True
        lbl = label.astype(jnp.int32).reshape(B, 1)
        if Bp != B:
            lbl = jnp.pad(lbl, ((0, Bp - B), (0, 0)), constant_values=-1)
        # Per-(batch-tile, class-tile) "has target" flags (scalar-prefetched to SMEM).
        row_tile = jnp.arange(B, dtype=jnp.int32) // tb
        cls_tile = label.astype(jnp.int32) // tc
        flags = jnp.zeros((nb * nct,), jnp.int32).at[row_tile * nct + cls_tile].set(1)

    kernel = functools.partial(
        _arcface_kernel,
        s=float(s), cos_m=float(math.cos(m)), sin_m=float(math.sin(m)),
        apply_margin=apply_margin, block_c=tc, ncps=ncps, nct=nct,
        num_valid_classes=C, mask_classes=mask_classes)

    # Re-derived VMEM budget with the ACTUAL streamed dtypes; stays well inside v7x's
    # 64 MiB physical VMEM while letting v5e/v6e (128 MiB) use larger tiles.
    w_bytes = jnp.dtype(w_stream.dtype).itemsize
    x_bytes = jnp.dtype(x.dtype).itemsize
    e_bytes = jnp.dtype(out_dtype).itemsize
    est = (2 * tc * D * w_bytes + 2 * tb * tc * e_bytes + 2 * tb * D * x_bytes
           + 2 * tc * 4 + tb * D * 2 + 8 * tb * 4)
    vmem_limit = int(min(max(int(1.4 * est) + (4 << 20), 32 << 20),
                         int(0.85 * vmem_cap)))

    grid = (n_split, nb, ncps)

    # TODO(synk): if DMA is still exposed at step boundaries, add
    # pipeline_mode=pl.Buffered(3) on the W / e BlockSpecs (VMEM headroom allows it).
    e, denom = pl.pallas_call(
        kernel,
        grid_spec=pltpu.PrefetchScalarGridSpec(
            num_scalar_prefetch=1,
            grid=grid,
            in_specs=[
                pl.BlockSpec((tb, D), lambda sp, i, j, fl: (i, 0)),              # x (resident)
                pl.BlockSpec((tc, D), lambda sp, i, j, fl: (sp * ncps + j, 0)),  # W (streamed)
                pl.BlockSpec((1, tc), lambda sp, i, j, fl: (0, sp * ncps + j)),  # winv row
                pl.BlockSpec((tb, 1), lambda sp, i, j, fl: (i, 0)),              # labels
            ],
            out_specs=[
                pl.BlockSpec((tb, tc), lambda sp, i, j, fl: (i, sp * ncps + j)), # exp(logit-s)
                pl.BlockSpec((tb, 1), lambda sp, i, j, fl: (sp * nb + i, 0)),    # partial denom
            ],
            scratch_shapes=[pltpu.VMEM((tb, D), jnp.bfloat16)]),                 # normalized x
        out_shape=[
            jax.ShapeDtypeStruct((Bp, Cp), out_dtype),
            jax.ShapeDtypeStruct((n_split * Bp, 1), jnp.float32),
        ],
        compiler_params=pltpu.CompilerParams(
            dimension_semantics=("parallel", "parallel", "arbitrary"),
            vmem_limit_bytes=vmem_limit),
    )(flags, x, w_stream, winv, lbl)

    denom_tot = jnp.sum(denom.reshape(n_split, Bp, 1), axis=0)
    # TODO(synk): this trailing divide re-reads/re-writes the full [B, C] matrix; a
    # consumer that only needs target log-probs should take (e, denom_tot) directly
    # (or set out_dtype=bf16) to remove/halve that final HBM pass.
    out = e[:B, :C].astype(jnp.float32) / denom_tot[:B]
    return out.astype(out_dtype)


# ----------------------------- references for verification ------------------------------

def _normalize_rows_f32(x, eps=1e-12):
    nrm = jnp.sqrt(jnp.sum(x * x, axis=1, keepdims=True))
    return x / jnp.maximum(nrm, eps)


def arcface_reference_f32(embed_vector, W, label=None, m=0.5, s=30.0):
    """Exact f32 mirror of the PyTorch module."""
    xn = _normalize_rows_f32(embed_vector.astype(jnp.float32))
    wn = _normalize_rows_f32(W.astype(jnp.float32))
    cos = xn @ wn.T
    if label is None:
        logit = cos * s
    else:
        sin = jnp.clip(jnp.sqrt(jnp.maximum(1.0 - cos ** 2, 0.0)), 1e-7, 1.0)
        cos_theta = cos * math.cos(m) - sin * math.sin(m)
        onehot = (jnp.arange(cos.shape[1])[None, :] == label[:, None]).astype(jnp.float32)
        logit = (cos * (1.0 - onehot) + cos_theta * onehot) * s
    return jax.nn.softmax(logit, axis=1)


def arcface_reference_mixed(embed_vector, W, label=None, m=0.5, s=30.0):
    """Pure-JAX reference mirroring the kernel's precision choices."""
    x32 = embed_vector.astype(jnp.float32)
    xn = (x32 * lax.rsqrt(jnp.maximum(jnp.sum(x32 * x32, axis=1, keepdims=True),
                                      1e-24))).astype(jnp.bfloat16)
    w32 = W.astype(jnp.float32)
    winv = lax.rsqrt(jnp.maximum(jnp.sum(w32 * w32, axis=1), 1e-24))
    raw = lax.dot_general(xn, W.astype(jnp.bfloat16),
                          dimension_numbers=(((1,), (1,)), ((), ())),
                          preferred_element_type=jnp.float32)
    cos = raw * winv[None, :]
    if label is None:
        logit = cos * s
    else:
        sin = jnp.clip(jnp.sqrt(jnp.maximum(1.0 - cos * cos, 0.0)), 1e-7, 1.0)
        cos_theta = cos * math.cos(m) - sin * math.sin(m)
        onehot = jnp.arange(cos.shape[1])[None, :] == label[:, None]
        logit = jnp.where(onehot, cos_theta, cos) * s
    e = jnp.exp(logit - s)
    return e / jnp.sum(e, axis=1, keepdims=True)


if __name__ == "__main__":
    # Small but tiling-exercising sizes: D = 512 (module default feature dim),
    # C = 1000 classes (pads to 1024 -> class-mask path), B = 12 (pads to 16).
    B, D, C = 12, 512, 1000
    m_margin, s_scale = 0.5, 30.0

    key = jax.random.PRNGKey(0)
    kx, kw, kl = jax.random.split(key, 3)
    x = jax.random.normal(kx, (B, D), dtype=jnp.float32)
    xavier_std = math.sqrt(2.0 / (D + C))          # nn.init.xavier_normal_ on W[C, D]
    W = jax.random.normal(kw, (C, D), dtype=jnp.float32) * xavier_std
    label = jax.random.randint(kl, (B,), 0, C, dtype=jnp.int32)

    # Config A: one batch tile -> class-range split axis engaged (grid (2, 1, 2)).
    fwd_split = functools.partial(arcface_forward, m=m_margin, s=s_scale,
                                  block_b=256, block_c=256)
    # Config B: two batch tiles, no split (grid (1, 2, 8)).
    fwd_multi = functools.partial(arcface_forward, m=m_margin, s=s_scale,
                                  block_b=8, block_c=128)

    out_train = jax.block_until_ready(fwd_split(x, W, label))   # margin path
    out_eval = jax.block_until_ready(fwd_split(x, W, None))     # inference path
    out_train2 = jax.block_until_ready(fwd_multi(x, W, label))  # alternative tiling

    assert out_train.shape == (B, C) and out_eval.shape == (B, C)

    # Tight check vs. a pure-JAX reference with the same precision choices.
    ref_train = arcface_reference_mixed(x, W, label, m=m_margin, s=s_scale)
    ref_eval = arcface_reference_mixed(x, W, None, m=m_margin, s=s_scale)
    assert jnp.allclose(out_train, ref_train, atol=1e-3, rtol=1e-3)
    assert jnp.allclose(out_eval, ref_eval, atol=1e-3, rtol=1e-3)
    assert jnp.allclose(out_train2, ref_train, atol=1e-3, rtol=1e-3)
    # Two tilings of the same computation must agree closely.
    assert jnp.allclose(out_train, out_train2, atol=1e-5)

    # Looser check vs. the exact-f32 PyTorch semantics (bf16 MXU rounding only).
    assert jnp.allclose(out_train, arcface_reference_f32(x, W, label, m=m_margin, s=s_scale),
                        atol=2e-2)
    assert jnp.allclose(out_eval, arcface_reference_f32(x, W, None, m=m_margin, s=s_scale),
                        atol=2e-2)

    # Softmax rows must sum to 1.
    assert jnp.allclose(jnp.sum(out_train, axis=1), 1.0, atol=1e-5)
    assert jnp.allclose(jnp.sum(out_eval, axis=1), 1.0, atol=1e-5)

    print("KERNEL_OK")
</pallas_src>

<mosaic_0001>
module attributes {stable_mosaic.version = 11 : i64} {
  func.func @_arcface_kernel(%arg0: i32, %arg1: i32, %arg2: i32, %arg3: memref<4xi32, #tpu.memory_space<smem>>, %arg4: memref<16x512xf32, #tpu.memory_space<vmem>>, %arg5: memref<256x512xbf16, #tpu.memory_space<vmem>>, %arg6: memref<1x256xf32, #tpu.memory_space<vmem>>, %arg7: memref<16x1xi32, #tpu.memory_space<vmem>>, %arg8: memref<16x256xf32, #tpu.memory_space<vmem>>, %arg9: memref<16x1xf32, #tpu.memory_space<vmem>>, %arg10: memref<16x512xbf16, #tpu.memory_space<vmem>>) attributes {dimension_semantics = [#tpu.dimension_semantics<parallel>, #tpu.dimension_semantics<parallel>, #tpu.dimension_semantics<arbitrary>], iteration_bounds = array<i64: 2, 1, 2>, scalar_prefetch = 1 : i64, scratch_operands = 1 : i64, tpu.core_type = #tpu.core_type<tc>, window_params = [{transform_indices = @transform_0, window_bounds = array<i64: 16, 512>}, {transform_indices = @transform_1, window_bounds = array<i64: 256, 512>}, {transform_indices = @transform_2, window_bounds = array<i64: 1, 256>}, {transform_indices = @transform_3, window_bounds = array<i64: 16, 1>}, {transform_indices = @transform_4, window_bounds = array<i64: 16, 256>}, {transform_indices = @transform_5, window_bounds = array<i64: 16, 1>}]} {
    %c0_i32 = arith.constant 0 : i32
    %0 = arith.cmpi eq, %arg2, %c0_i32 : i32
    %1 = arith.extui %0 : i1 to i32
    %c0_i32_0 = arith.constant 0 : i32
    %2 = arith.cmpi ne, %1, %c0_i32_0 : i32
    scf.if %2 {
      %c0_9 = arith.constant 0 : index
      %c0_10 = arith.constant 0 : index
      %25 = vector.load %arg4[%c0_9, %c0_10] : memref<16x512xf32, #tpu.memory_space<vmem>>, vector<16x512xf32>
      %26 = arith.mulf %25, %25 : vector<16x512xf32>
      %cst_11 = arith.constant dense<0.000000e+00> : vector<16xf32>
      %27 = vector.multi_reduction <add>, %26, %cst_11 [1] : vector<16x512xf32> to vector<16xf32>
      %28 = vector.shape_cast %27 : vector<16xf32> to vector<16x1xf32>
      %cst_12 = arith.constant 1.000000e-24 : f32
      %29 = vector.broadcast %cst_12 : f32 to vector<16x1xf32>
      %30 = arith.maximumf %28, %29 : vector<16x1xf32>
      %31 = math.rsqrt %30 : vector<16x1xf32>
      %32 = vector.broadcast %31 : vector<16x1xf32> to vector<16x512xf32>
      %33 = arith.mulf %25, %32 : vector<16x512xf32>
      %34 = arith.truncf %33 : vector<16x512xf32> to vector<16x512xbf16>
      %c0_13 = arith.constant 0 : index
      %c0_14 = arith.constant 0 : index
      %35 = vector.load %arg10[%c0_13, %c0_14] : memref<16x512xbf16, #tpu.memory_space<vmem>>, vector<16x512xbf16>
      tpu.vector_store %arg10[%c0_13, %c0_14], %34 {strides = array<i32>} : memref<16x512xbf16, #tpu.memory_space<vmem>>, vector<16x512xbf16>,
      %cst_15 = arith.constant 0.000000e+00 : f32
      %36 = vector.broadcast %cst_15 : f32 to vector<16x1xf32>
      %c0_16 = arith.constant 0 : index
      %c0_17 = arith.constant 0 : index
      %37 = vector.load %arg9[%c0_16, %c0_17] : memref<16x1xf32, #tpu.memory_space<vmem>>, vector<16x1xf32>
      tpu.vector_store %arg9[%c0_16, %c0_17], %36 {strides = array<i32>} : memref<16x1xf32, #tpu.memory_space<vmem>>, vector<16x1xf32>,
    } else {
    }
    %c0 = arith.constant 0 : index
    %c0_1 = arith.constant 0 : index
    %3 = vector.load %arg5[%c0, %c0_1] : memref<256x512xbf16, #tpu.memory_space<vmem>>, vector<256x512xbf16>
    %c0_2 = arith.constant 0 : index
    %c0_3 = arith.constant 0 : index
    %4 = vector.load %arg10[%c0_2, %c0_3] : memref<16x512xbf16, #tpu.memory_space<vmem>>, vector<16x512xbf16>
    %cst = arith.constant dense<0.000000e+00> : vector<16x256xf32>
    %5 = tpu.matmul %4, %3, %cst {dimension_numbers = #tpu.dot_dimension_numbers<[1], [1], [0], [0], [0, 0, 1, 0], [], []>} : vector<16x512xbf16>, vector<256x512xbf16>, vector<16x256xf32> -> vector<16x256xf32>
    %c0_4 = arith.constant 0 : index
    %c0_5 = arith.constant 0 : index
    %6 = vector.load %arg6[%c0_4, %c0_5] : memref<1x256xf32, #tpu.memory_space<vmem>>, vector<1x256xf32>
    %7 = vector.broadcast %6 : vector<1x256xf32> to vector<16x256xf32>
    %8 = arith.mulf %5, %7 : vector<16x256xf32>
    %c2_i32 = arith.constant 2 : i32
    %9 = arith.muli %arg0, %c2_i32 : i32
    %10 = arith.addi %9, %arg2 : i32
    %c256_i32 = arith.constant 256 : i32
    %11 = arith.muli %10, %c256_i32 : i32
    %12 = tpu.iota {dimensions = array<i32: 1>} : vector<16x256xi32>
    %13 = vector.broadcast %11 : i32 to vector<16x256xi32>
    %14 = arith.addi %13, %12 : vector<16x256xi32>
    %c4_i32 = arith.constant 4 : i32
    %15 = arith.muli %arg1, %c4_i32 : i32
    %16 = arith.addi %15, %10 : i32
    %17 = arith.index_cast %16 : i32 to index
    %18 = memref.load %arg3[%17] : memref<4xi32, #tpu.memory_space<smem>>
    %c0_i32_6 = arith.constant 0 : i32
    %19 = arith.cmpi sgt, %18, %c0_i32_6 : i32
    %20 = arith.extui %19 : i1 to i32
    %c0_i32_7 = arith.constant 0 : i32
    %21 = arith.cmpi ne, %20, %c0_i32_7 : i32
    scf.if %21 {
      %25 = arith.mulf %8, %8 : vector<16x256xf32>
      %cst_9 = arith.constant 1.000000e+00 : f32
      %26 = vector.broadcast %cst_9 : f32 to vector<16x256xf32>
      %27 = arith.subf %26, %25 : vector<16x256xf32>
      %cst_10 = arith.constant 0.000000e+00 : f32
      %28 = vector.broadcast %cst_10 : f32 to vector<16x256xf32>
      %29 = arith.maximumf %27, %28 : vector<16x256xf32>
      %30 = math.sqrt %29 : vector<16x256xf32>
      %cst_11 = arith.constant 1.000000e-07 : f32
      %cst_12 = arith.constant 1.000000e+00 : f32
      %31 = vector.broadcast %cst_11 : f32 to vector<16x256xf32>
      %32 = arith.maximumf %31, %30 : vector<16x256xf32>
      %33 = vector.broadcast %cst_12 : f32 to vector<16x256xf32>
      %34 = arith.minimumf %33, %32 : vector<16x256xf32>
      %cst_13 = arith.constant 0.87758255 : f32
      %35 = vector.broadcast %cst_13 : f32 to vector<16x256xf32>
      %36 = arith.mulf %8, %35 : vector<16x256xf32>
      %cst_14 = arith.constant 0.47942555 : f32
      %37 = vector.broadcast %cst_14 : f32 to vector<16x256xf32>
      %38 = arith.mulf %34, %37 : vector<16x256xf32>
      %39 = arith.subf %36, %38 : vector<16x256xf32>
      %c0_15 = arith.constant 0 : index
      %c0_16 = arith.constant 0 : index
      %40 = vector.load %arg7[%c0_15, %c0_16] : memref<16x1xi32, #tpu.memory_space<vmem>>, vector<16x1xi32>
      %41 = vector.broadcast %40 : vector<16x1xi32> to vector<16x256xi32>
      %42 = arith.cmpi eq, %14, %41 : vector<16x256xi32>
      %43 = arith.select %42, %39, %8 : vector<16x256xi1>, vector<16x256xf32>
      %cst_17 = arith.constant 3.000000e+01 : f32
      %44 = vector.broadcast %cst_17 : f32 to vector<16x256xf32>
      %45 = arith.mulf %43, %44 : vector<16x256xf32>
      %cst_18 = arith.constant 3.000000e+01 : f32
      %46 = vector.broadcast %cst_18 : f32 to vector<16x256xf32>
      %47 = arith.subf %45, %46 : vector<16x256xf32>
      %48 = math.exp %47 : vector<16x256xf32>
      %c1000_i32 = arith.constant 1000 : i32
      %49 = vector.broadcast %c1000_i32 : i32 to vector<16x256xi32>
      %50 = arith.cmpi slt, %14, %49 : vector<16x256xi32>
      %cst_19 = arith.constant 0.000000e+00 : f32
      %51 = vector.broadcast %cst_19 : f32 to vector<16x256xf32>
      %52 = arith.select %50, %48, %51 : vector<16x256xi1>, vector<16x256xf32>
      %c0_20 = arith.constant 0 : index
      %c0_21 = arith.constant 0 : index
      %53 = vector.load %arg8[%c0_20, %c0_21] : memref<16x256xf32, #tpu.memory_space<vmem>>, vector<16x256xf32>
      tpu.vector_store %arg8[%c0_20, %c0_21], %52 {strides = array<i32>} : memref<16x256xf32, #tpu.memory_space<vmem>>, vector<16x256xf32>,
      %c0_22 = arith.constant 0 : index
      %c0_23 = arith.constant 0 : index
      %54 = vector.load %arg9[%c0_22, %c0_23] : memref<16x1xf32, #tpu.memory_space<vmem>>, vector<16x1xf32>
      %cst_24 = arith.constant dense<0.000000e+00> : vector<16xf32>
      %55 = vector.multi_reduction <add>, %52, %cst_24 [1] : vector<16x256xf32> to vector<16xf32>
      %56 = vector.shape_cast %55 : vector<16xf32> to vector<16x1xf32>
      %57 = arith.addf %54, %56 : vector<16x1xf32>
      %c0_25 = arith.constant 0 : index
      %c0_26 = arith.constant 0 : index
      %58 = vector.load %arg9[%c0_25, %c0_26] : memref<16x1xf32, #tpu.memory_space<vmem>>, vector<16x1xf32>
      tpu.vector_store %arg9[%c0_25, %c0_26], %57 {strides = array<i32>} : memref<16x1xf32, #tpu.memory_space<vmem>>, vector<16x1xf32>,
    } else {
    }
    %true = arith.constant true
    %22 = arith.xori %19, %true : i1
    %23 = arith.extui %22 : i1 to i32
    %c0_i32_8 = arith.constant 0 : i32
    %24 = arith.cmpi ne, %23, %c0_i32_8 : i32
    scf.if %24 {
      %cst_9 = arith.constant 3.000000e+01 : f32
      %25 = vector.broadcast %cst_9 : f32 to vector<16x256xf32>
      %26 = arith.mulf %8, %25 : vector<16x256xf32>
      %cst_10 = arith.constant 3.000000e+01 : f32
      %27 = vector.broadcast %cst_10 : f32 to vector<16x256xf32>
      %28 = arith.subf %26, %27 : vector<16x256xf32>
      %29 = math.exp %28 : vector<16x256xf32>
      %c1000_i32 = arith.constant 1000 : i32
      %30 = vector.broadcast %c1000_i32 : i32 to vector<16x256xi32>
      %31 = arith.cmpi slt, %14, %30 : vector<16x256xi32>
      %cst_11 = arith.constant 0.000000e+00 : f32
      %32 = vector.broadcast %cst_11 : f32 to vector<16x256xf32>
      %33 = arith.select %31, %29, %32 : vector<16x256xi1>, vector<16x256xf32>
      %c0_12 = arith.constant 0 : index
      %c0_13 = arith.constant 0 : index
      %34 = vector.load %arg8[%c0_12, %c0_13] : memref<16x256xf32, #tpu.memory_space<vmem>>, vector<16x256xf32>
      tpu.vector_store %arg8[%c0_12, %c0_13], %33 {strides = array<i32>} : memref<16x256xf32, #tpu.memory_space<vmem>>, vector<16x256xf32>,
      %c0_14 = arith.constant 0 : index
      %c0_15 = arith.constant 0 : index
      %35 = vector.load %arg9[%c0_14, %c0_15] : memref<16x1xf32, #tpu.memory_space<vmem>>, vector<16x1xf32>
      %cst_16 = arith.constant dense<0.000000e+00> : vector<16xf32>
      %36 = vector.multi_reduction <add>, %33, %cst_16 [1] : vector<16x256xf32> to vector<16xf32>
      %37 = vector.shape_cast %36 : vector<16xf32> to vector<16x1xf32>
      %38 = arith.addf %35, %37 : vector<16x1xf32>
      %c0_17 = arith.constant 0 : index
      %c0_18 = arith.constant 0 : index
      %39 = vector.load %arg9[%c0_17, %c0_18] : memref<16x1xf32, #tpu.memory_space<vmem>>, vector<16x1xf32>
      tpu.vector_store %arg9[%c0_17, %c0_18], %38 {strides = array<i32>} : memref<16x1xf32, #tpu.memory_space<vmem>>, vector<16x1xf32>,
    } else {
    }
    return
  }
  func.func @transform_0(%arg0: i32, %arg1: i32, %arg2: i32, %arg3: memref<4xi32, #tpu.memory_space<smem>>) -> (i32, i32) {
    %c0_i32 = arith.constant 0 : i32
    %c0_i32_0 = arith.constant 0 : i32
    return %arg1, %c0_i32 : i32, i32
  }
  func.func @transform_1(%arg0: i32, %arg1: i32, %arg2: i32, %arg3: memref<4xi32, #tpu.memory_space<smem>>) -> (i32, i32) {
    %c2_i32 = arith.constant 2 : i32
    %0 = arith.muli %arg0, %c2_i32 : i32
    %1 = arith.addi %0, %arg2 : i32
    %c0_i32 = arith.constant 0 : i32
    %c0_i32_0 = arith.constant 0 : i32
    return %1, %c0_i32 : i32, i32
  }
  func.func @transform_2(%arg0: i32, %arg1: i32, %arg2: i32, %arg3: memref<4xi32, #tpu.memory_space<smem>>) -> (i32, i32) {
    %c2_i32 = arith.constant 2 : i32
    %0 = arith.muli %arg0, %c2_i32 : i32
    %1 = arith.addi %0, %arg2 : i32
    %c0_i32 = arith.constant 0 : i32
    %c0_i32_0 = arith.constant 0 : i32
    return %c0_i32, %1 : i32, i32
  }
  func.func @transform_3(%arg0: i32, %arg1: i32, %arg2: i32, %arg3: memref<4xi32, #tpu.memory_space<smem>>) -> (i32, i32) {
    %c0_i32 = arith.constant 0 : i32
    %c0_i32_0 = arith.constant 0 : i32
    return %arg1, %c0_i32 : i32, i32
  }
  func.func @transform_4(%arg0: i32, %arg1: i32, %arg2: i32, %arg3: memref<4xi32, #tpu.memory_space<smem>>) -> (i32, i32) {
    %c2_i32 = arith.constant 2 : i32
    %0 = arith.muli %arg0, %c2_i32 : i32
    %1 = arith.addi %0, %arg2 : i32
    %c0_i32 = arith.constant 0 : i32
    return %arg1, %1 : i32, i32
  }
  func.func @transform_5(%arg0: i32, %arg1: i32, %arg2: i32, %arg3: memref<4xi32, #tpu.memory_space<smem>>) -> (i32, i32) {
    %c1_i32 = arith.constant 1 : i32
    %0 = arith.muli %arg0, %c1_i32 : i32
    %1 = arith.addi %0, %arg1 : i32
    %c0_i32 = arith.constant 0 : i32
    %c0_i32_0 = arith.constant 0 : i32
    return %1, %c0_i32 : i32, i32
  }
}

</mosaic_0001>

<llo_original>
// kernel: tpu_custom_call.1
$region0: #{tpu_custom_call.1}
  #allocation0 [shape = 'u32[]', space=smem, size = 0x4, offset = 0x4, fixed_abs, tag = 'smem constant byte address 0x4 - core index']
  #allocation1 [shape = 'u32[144,128]{1,0:T(1,128)}', space=vmem, size = 0x12000, scoped, tag = 'internal scratch']
  #allocation2 [shape = 'bf16[16,512]{1,0:T(16,128)(2,1)}', space=vmem, size = 0x4000, scoped, tag = 'scratch operand']
  #allocation3 [shape = 's32[1]{0}', space=sflag, size = 0x4, scoped, tag = 'scoped memory for tpu_custom_call.1']
  #allocation4 [shape = 'u8[512]{0}', space=smem, size = 0x200, scoped, tag = 'prefetched SMEM operand 0']
  %s0 = inlined_call_operand.vmem [shape: s32[4], index: 0, kind: input, shape index: {}]
  %s1 = inlined_call_operand.hbm [shape: f32[16,512], index: 1, kind: input, shape index: {}]
  %s2 = inlined_call_operand.hbm [shape: bf16[1024,512], index: 2, kind: input, shape index: {}]
  %s3 = inlined_call_operand.vmem [shape: f32[1,1024], index: 3, kind: input, shape index: {}]
  %s4 = inlined_call_operand.vmem [shape: s32[16,1], index: 4, kind: input, shape index: {}]
  %s5 = inlined_call_operand.hbm [shape: f32[16,1024], index: 5, kind: output, shape index: {0}]
  %s6 = inlined_call_operand.vmem [shape: f32[32,1], index: 6, kind: output, shape index: {1}]
  %7 = xla_tuple %s5, %s6
  %s8 = sld [smem:[#allocation0]]
  $region77: #{tpu_custom_call.1} parent=0
    _
  %s10 = ssub.s32 1, %s8
  %s11 = scalar_select 0, %s10, %s8
  %s12 = sshll.u32 %s0, 4
  %s13 = int_to_ptr.vmem [resolvable:$true] %s12
  %15 = dma.vmem_to_smem %s13, 16, [#allocation4], [#allocation3]
  %16 = dma.done [#allocation3], 16
  %17 = sfence
  $region1: #{tpu_custom_call.1} parent=0
    #allocation5 [shape = 'u8[32768]{0}', space=vmem, size = 0x8000, scoped, tag = 'input window, operand 1, single buffered']
    #allocation6 [shape = 's32[2]{0}', space=sflag, size = 0x8, scoped, tag = 'scoped memory for tpu_custom_call.1']
    #allocation7 [shape = 's32[2]{0}', space=sflag, size = 0x8, scoped, tag = 'scoped memory for tpu_custom_call.1']
    #allocation8 [shape = 'u8[524288]{0}', space=vmem, size = 0x80000, scoped, tag = 'input window, operand 2']
    #allocation9 [shape = 's32[2]{0}', space=sflag, size = 0x8, scoped, tag = 'scoped memory for tpu_custom_call.1']
    #allocation10 [shape = 'u8[32768]{0}', space=vmem, size = 0x8000, scoped, tag = 'output window, operand 0']
    %18 = vsyncpa [#allocation6], 0
    %19 = vsyncpa [#allocation9], 0
    %s20 = scalar_lea.sflag [#allocation9], 1
    %21 = vsyncpa %s20, 0
    %22 = vsyncpa [#allocation7], 0
    %s23 = scalar_lea.sflag [#allocation7], 1
    %24 = vsyncpa %s23, 0
    loop: start=0, step=1, limit=6
    $region2: #{tpu_custom_call.1} parent=1 // loop_pre_header
      _
    $region3: #{tpu_custom_call.1} parent=1 // loop_header
      %s26 = sphi 0, %s30
      %p27 = scmp.ge.s32.totalorder %s26, 6
      %s33 = sphi 0, %s52
      %s34 = sphi 0, %s48
      %s35 = sphi 0, %s44
      %s36 = sphi 0, %s33
      %s37 = sphi 0, %s34
      %s38 = sphi 0, %s35
      %s39 = sphi 0, %s36
      %s40 = sphi 0, %s37
      %s41 = sphi 0, %s38
      %s55 = sphi 0, %s57
      %s58 = sphi 0, %s55
      %s59 = sphi 0, %s58
      %s75 = sphi 0, %s59
      %s85 = sphi 0, %s87
      %s88 = sphi 0, %s85
      %s89 = sphi 0, %s88
      %s105 = sphi 0, %s89
      %s115 = sphi 0, %s117
      %s118 = sphi 0, %s115
      %s119 = sphi 0, %s118
      %s135 = sphi 0, %s119
      %s141 = sphi 0, %s143
      %s144 = sphi 0, %s141
      %s145 = sphi 0, %s144
      %s161 = sphi 0, %s145
      %s173 = sphi 0, %s175
      %s176 = sphi 0, %s173
      %s177 = sphi 0, %s176
      %s193 = sphi 0, %s177
      %s201 = sphi 0, %s203
      %s204 = sphi 0, %s201
      %s205 = sphi 0, %s204
      %s221 = sphi 0, %s205
    $region4: #{tpu_custom_call.1} parent=1 // loop_header_branch
      %29 = sbr.rel (%p27) target = $region8
    $region5: #{tpu_custom_call.1} parent=1 // loop_body
      %s31 = ssub.s32 %s26, 1
      %s32 = ssub.s32 %s26, 2
      %s42 = sadd.s32 1, %s35
      %p43 = scmp.ge.s32.totalorder %s42, 2
      %s44 = scalar_select %p43, 0, %s42
      %s45 = sadd.s32 1, %s34
      %s46 = scalar_select %p43, %s45, %s34
      %p47 = scmp.ge.s32.totalorder %s46, 1
      %s48 = scalar_select %p47, 0, %s46
      %s49 = sadd.s32 1, %s33
      %s50 = scalar_select %p47, %s49, %s33
      %p51 = scmp.ge.s32.totalorder %s50, 2
      %s52 = scalar_select %p51, 0, %s50
      %s53 = ssub.s32 %s34, %s48
      %p54 = scmp.eq.s32.totalorder %s53, 0
      %s56 = sadd.s32 %s55, 1
      %s57 = scalar_select %p54, %s55, %s56
      %p60 = pneg %p54
      %p61 = scmp.eq.s32.totalorder %s26, 3
      %p62 = por %p60, %p61
      %p63 = scmp.ne.s32.totalorder %s55, %s58
      %p64 = scmp.eq.s32.totalorder %s26, 0
      %p65 = por %p63, %p64
      %p66 = scmp.ne.s32.totalorder %s55, %s58
      %p67 = scmp.eq.s32.totalorder %s31, 3
      %p68 = por %p66, %p67
      %p69 = scmp.ne.s32.totalorder %s58, %s59
      %p70 = scmp.eq.s32.totalorder %s31, 0
      %p71 = por %p69, %p70
      %p72 = scmp.ne.s32.totalorder %s58, %s59
      %p73 = scmp.eq.s32.totalorder %s32, 3
      %p74 = por %p72, %p73
      %p76 = scmp.ne.s32.totalorder %s59, %s75
      %p77 = scmp.eq.s32.totalorder %s32, 0
      %p78 = por %p76, %p77
      %s79 = smul.u32 %s33, 2
      %s80 = sadd.s32 %s79, %s35
      %s81 = smul.u32 %s52, 2
      %s82 = sadd.s32 %s81, %s44
      %s83 = ssub.s32 %s80, %s82
      %p84 = scmp.eq.s32.totalorder %s83, 0
      %s86 = sadd.s32 %s85, 1
      %s87 = scalar_select %p84, %s85, %s86
      %p90 = pneg %p84
      %p91 = scmp.eq.s32.totalorder %s26, 3
      %p92 = por %p90, %p91
      %p93 = scmp.ne.s32.totalorder %s85, %s88
      %p94 = scmp.eq.s32.totalorder %s26, 0
      %p95 = por %p93, %p94
      %p96 = scmp.ne.s32.totalorder %s85, %s88
      %p97 = scmp.eq.s32.totalorder %s31, 3
      %p98 = por %p96, %p97
      %p99 = scmp.ne.s32.totalorder %s88, %s89
      %p100 = scmp.eq.s32.totalorder %s31, 0
      %p101 = por %p99, %p100
      %p102 = scmp.ne.s32.totalorder %s88, %s89
      %p103 = scmp.eq.s32.totalorder %s32, 3
      %p104 = por %p102, %p103
      %p106 = scmp.ne.s32.totalorder %s89, %s105
      %p107 = scmp.eq.s32.totalorder %s32, 0
      %p108 = por %p106, %p107
      %s109 = smul.u32 %s33, 2
      %s110 = sadd.s32 %s109, %s35
      %s111 = smul.u32 %s52, 2
      %s112 = sadd.s32 %s111, %s44
      %s113 = ssub.s32 %s110, %s112
      %p114 = scmp.eq.s32.totalorder %s113, 0
      %s116 = sadd.s32 %s115, 1
      %s117 = scalar_select %p114, %s115, %s116
      %p120 = pneg %p114
      %p121 = scmp.eq.s32.totalorder %s26, 3
      %p122 = por %p120, %p121
      %p123 = scmp.ne.s32.totalorder %s115, %s118
      %p124 = scmp.eq.s32.totalorder %s26, 0
      %p125 = por %p123, %p124
      %p126 = scmp.ne.s32.totalorder %s115, %s118
      %p127 = scmp.eq.s32.totalorder %s31, 3
      %p128 = por %p126, %p127
      %p129 = scmp.ne.s32.totalorder %s118, %s119
      %p130 = scmp.eq.s32.totalorder %s31, 0
      %p131 = por %p129, %p130
      %p132 = scmp.ne.s32.totalorder %s118, %s119
      %p133 = scmp.eq.s32.totalorder %s32, 3
      %p134 = por %p132, %p133
      %p136 = scmp.ne.s32.totalorder %s119, %s135
      %p137 = scmp.eq.s32.totalorder %s32, 0
      %p138 = por %p136, %p137
      %s139 = ssub.s32 %s34, %s48
      %p140 = scmp.eq.s32.totalorder %s139, 0
      %s142 = sadd.s32 %s141, 1
      %s143 = scalar_select %p140, %s141, %s142
      %p146 = pneg %p140
      %p147 = scmp.eq.s32.totalorder %s26, 3
      %p148 = por %p146, %p147
      %p149 = scmp.ne.s32.totalorder %s141, %s144
      %p150 = scmp.eq.s32.totalorder %s26, 0
      %p151 = por %p149, %p150
      %p152 = scmp.ne.s32.totalorder %s141, %s144
      %p153 = scmp.eq.s32.totalorder %s31, 3
      %p154 = por %p152, %p153
      %p155 = scmp.ne.s32.totalorder %s144, %s145
      %p156 = scmp.eq.s32.totalorder %s31, 0
      %p157 = por %p155, %p156
      %p158 = scmp.ne.s32.totalorder %s144, %s145
      %p159 = scmp.eq.s32.totalorder %s32, 3
      %p160 = por %p158, %p159
      %p162 = scmp.ne.s32.totalorder %s145, %s161
      %p163 = scmp.eq.s32.totalorder %s32, 0
      %p164 = por %p162, %p163
      %s165 = smul.u32 %s33, 2
      %s166 = sadd.s32 %s165, %s35
      %s167 = smul.u32 %s52, 2
      %s168 = sadd.s32 %s167, %s44
      %s169 = ssub.s32 %s34, %s48
      %s170 = ssub.s32 %s166, %s168
      %s171 = sor.u32 %s169, %s170
      %p172 = scmp.eq.s32.totalorder %s171, 0
      %s174 = sadd.s32 %s173, 1
      %s175 = scalar_select %p172, %s173, %s174
      %p178 = pneg %p172
      %p179 = scmp.eq.s32.totalorder %s26, 3
      %p180 = por %p178, %p179
      %p181 = scmp.ne.s32.totalorder %s173, %s176
      %p182 = scmp.eq.s32.totalorder %s26, 0
      %p183 = por %p181, %p182
      %p184 = scmp.ne.s32.totalorder %s173, %s176
      %p185 = scmp.eq.s32.totalorder %s31, 3
      %p186 = por %p184, %p185
      %p187 = scmp.ne.s32.totalorder %s176, %s177
      %p188 = scmp.eq.s32.totalorder %s31, 0
      %p189 = por %p187, %p188
      %p190 = scmp.ne.s32.totalorder %s176, %s177
      %p191 = scmp.eq.s32.totalorder %s32, 3
      %p192 = por %p190, %p191
      %p194 = scmp.ne.s32.totalorder %s177, %s193
      %p195 = scmp.eq.s32.totalorder %s32, 0
      %p196 = por %p194, %p195
      %s197 = sadd.s32 %s33, %s34
      %s198 = sadd.s32 %s52, %s48
      %s199 = ssub.s32 %s197, %s198
      %p200 = scmp.eq.s32.totalorder %s199, 0
      %s202 = sadd.s32 %s201, 1
      %s203 = scalar_select %p200, %s201, %s202
      %p206 = pneg %p200
      %p207 = scmp.eq.s32.totalorder %s26, 3
      %p208 = por %p206, %p207
      %p209 = scmp.ne.s32.totalorder %s201, %s204
      %p210 = scmp.eq.s32.totalorder %s26, 0
      %p211 = por %p209, %p210
      %p212 = scmp.ne.s32.totalorder %s201, %s204
      %p213 = scmp.eq.s32.totalorder %s31, 3
      %p214 = por %p212, %p213
      %p215 = scmp.ne.s32.totalorder %s204, %s205
      %p216 = scmp.eq.s32.totalorder %s31, 0
      %p217 = por %p215, %p216
      %p218 = scmp.ne.s32.totalorder %s204, %s205
      %p219 = scmp.eq.s32.totalorder %s32, 3
      %p220 = por %p218, %p219
      %p222 = scmp.ne.s32.totalorder %s205, %s221
      %p223 = scmp.eq.s32.totalorder %s32, 0
      %p224 = por %p222, %p223
      %p225 = scmp.le.s32.totalorder 1, %s26
      %p226 = scmp.lt.s32.totalorder %s26, 5
      %p227 = pnand %p225, %p226
      %p228 = pneg %p227
      // Predicated region
      $region9: #{tpu_custom_call.1} parent=5 // pred_check
        _
      $region10: #{tpu_custom_call.1} parent=5 // pred_check_branch
        %230 = sbr.rel (%p227) target = $region12
      $region11: #{tpu_custom_call.1} parent=5 // pred_region
        %s231 = ssub.s32 %s26, 1
        // Predicated region
        $region13: #{tpu_custom_call.1} parent=11 // pred_check
          %p232 = pneg %p71
        $region14: #{tpu_custom_call.1} parent=11 // pred_check_branch
          %234 = sbr.rel (%p232) target = $region16
        $region15: #{tpu_custom_call.1} parent=11 // pred_region
          %s235 = smul.u32 2, %s37
          %s237 = ssub.s32 1024, 1024
          %238 = vsyncadd [#allocation6], %s237
          %s239 = smul.addr %s235, 4
          %s240 = smul.addr %s239, 128
          %s241 = scalar_lea.hbm %s1, %s240
          %s242 = sshll.u32 [#allocation5], 4
          %s243 = int_to_ptr.vmem [resolvable:$true] %s242
          %248 = dma.hbm_to_vmem [thread:$0]  %s241, 1024, %s243, [#allocation6], 512, 512, 32
        $region16: #{tpu_custom_call.1} parent=11 // pred_fallthru
          _
        // Predicated region
        $region17: #{tpu_custom_call.1} parent=11 // pred_check
          %p249 = pneg %p157
        $region18: #{tpu_custom_call.1} parent=11 // pred_check_branch
          %251 = sbr.rel (%p249) target = $region20
        $region19: #{tpu_custom_call.1} parent=11 // pred_region
          %s252 = smul.u32 2, %s37
          %p253 = scmp.lt.s32.totalorder %s252, 1
          %s254 = scalar_select %p253, %s252, 1
          %s255 = smul.addr %s254, 8
          %s256 = scalar_lea.vmem %s4, %s255
          %s257 = smul.u32 2, %s37
        $region20: #{tpu_custom_call.1} parent=11 // pred_fallthru
          _
      $region12: #{tpu_custom_call.1} parent=5 // pred_fallthru
        _
      %p258 = scmp.lt.s32.totalorder %s26, 4
      // Predicated region
      $region21: #{tpu_custom_call.1} parent=5 // pred_check
        %p259 = pneg %p258
      $region22: #{tpu_custom_call.1} parent=5 // pred_check_branch
        %261 = sbr.rel (%p259) target = $region24
      $region23: #{tpu_custom_call.1} parent=5 // pred_region
        // Predicated region
        $region25: #{tpu_custom_call.1} parent=23 // pred_check
          %p262 = pneg %p95
        $region26: #{tpu_custom_call.1} parent=23 // pred_check_branch
          %264 = sbr.rel (%p262) target = $region28
        $region27: #{tpu_custom_call.1} parent=23 // pred_region
          %s265 = sand.u32 %s85, 1
          %s266 = scalar_lea.sflag [#allocation9], %s265
          %s267 = sand.u32 %s85, 1
          %s268 = smul.addr %s267, 512
          %s269 = scalar_lea.vmem [#allocation8], %s268
          %s270 = smul.u32 %s33, 2
          %s271 = sadd.s32 %s270, %s35
          %s272 = smul.u32 32, %s271
          %s274 = ssub.s32 8192, 8192
          %275 = vsyncadd %s266, %s274
          %s276 = smul.addr %s272, 4
          %s277 = smul.addr %s276, 64
          %s278 = scalar_lea.hbm %s2, %s277
          %s279 = sshll.u32 %s269, 4
          %s280 = int_to_ptr.vmem [resolvable:$true] %s279
          %285 = dma.hbm_to_vmem [thread:$0]  %s278, 8192, %s280, %s266, 256, 256, 16
        $region28: #{tpu_custom_call.1} parent=23 // pred_fallthru
          _
        // Predicated region
        $region29: #{tpu_custom_call.1} parent=23 // pred_check
          %p286 = pneg %p125
        $region30: #{tpu_custom_call.1} parent=23 // pred_check_branch
          %288 = sbr.rel (%p286) target = $region32
        $region31: #{tpu_custom_call.1} parent=23 // pred_region
          %s289 = smul.u32 %s33, 2
          %s290 = sadd.s32 %s289, %s35
          %s291 = smul.u32 2, %s290
          %p292 = scmp.lt.s32.totalorder %s291, 7
          %s293 = scalar_select %p292, %s291, 7
          %s294 = scalar_lea.vmem %s3, %s293
          %s295 = smul.u32 %s33, 2
          %s296 = sadd.s32 %s295, %s35
          %s297 = smul.u32 2, %s296
        $region32: #{tpu_custom_call.1} parent=23 // pred_fallthru
          _
      $region24: #{tpu_custom_call.1} parent=5 // pred_fallthru
        _
      %p298 = scmp.le.s32.totalorder 1, %s26
      %p299 = scmp.lt.s32.totalorder %s26, 5
      %p300 = pnand %p298, %p299
      %p301 = pneg %p300
      // Predicated region
      $region33: #{tpu_custom_call.1} parent=5 // pred_check
        _
      $region34: #{tpu_custom_call.1} parent=5 // pred_check_branch
        %303 = sbr.rel (%p300) target = $region36
      $region35: #{tpu_custom_call.1} parent=5 // pred_region
        %s304 = ssub.s32 %s26, 1
        // Predicated region
        $region37: #{tpu_custom_call.1} parent=35 // pred_check
          %p305 = pneg %p71
        $region38: #{tpu_custom_call.1} parent=35 // pred_check_branch
          %307 = sbr.rel (%p305) target = $region40
        $region39: #{tpu_custom_call.1} parent=35 // pred_region
          %308 = dma.done [#allocation6], 1024
        $region40: #{tpu_custom_call.1} parent=35 // pred_fallthru
          _
        %s309 = sand.u32 %s88, 1
        %s310 = scalar_lea.sflag [#allocation9], %s309
        %s311 = sand.u32 %s88, 1
        %s312 = smul.addr %s311, 512
        %s313 = scalar_lea.vmem [#allocation8], %s312
        // Predicated region
        $region41: #{tpu_custom_call.1} parent=35 // pred_check
          %p314 = pneg %p101
        $region42: #{tpu_custom_call.1} parent=35 // pred_check_branch
          %316 = sbr.rel (%p314) target = $region44
        $region43: #{tpu_custom_call.1} parent=35 // pred_region
          %317 = dma.done %s310, 8192
        $region44: #{tpu_custom_call.1} parent=35 // pred_fallthru
          _
        %p318 = pneg %p71
        %p319 = pneg %p68
        %s320 = sand.u32 %s88, 1
        %s321 = scalar_lea.sflag [#allocation9], %s320
        %s322 = sand.u32 %s88, 1
        %s323 = smul.addr %s322, 512
        %s324 = scalar_lea.vmem [#allocation8], %s323
        %p325 = pneg %p101
        %p326 = pneg %p98
        %s327 = smul.u32 %s36, 2
        %s328 = sadd.s32 %s327, %s38
        %s329 = smul.u32 2, %s328
        %p330 = scmp.lt.s32.totalorder %s329, 7
        %s331 = scalar_select %p330, %s329, 7
        %s332 = scalar_lea.vmem %s3, %s331
        %p333 = pneg %p131
        %p334 = pneg %p128
        %s335 = smul.u32 2, %s37
        %p336 = scmp.lt.s32.totalorder %s335, 1
        %s337 = scalar_select %p336, %s335, 1
        %s338 = smul.addr %s337, 8
        %s339 = scalar_lea.vmem %s4, %s338
        %p340 = pneg %p157
        %p341 = pneg %p154
        %p342 = pneg %p189
        %p343 = pneg %p186
        %s344 = sand.u32 %s176, 1
        %s345 = scalar_lea.sflag [#allocation7], %s344
        %s346 = sand.u32 %s176, 1
        %s347 = smul.addr %s346, 32
        %s348 = scalar_lea.vmem [#allocation10], %s347
        %p349 = pneg %p217
        %p350 = pneg %p214
        %s351 = sadd.s32 %s36, %s37
        %s352 = smul.u32 2, %s351
        %p353 = scmp.lt.s32.totalorder %s352, 3
        %s354 = scalar_select %p353, %s352, 3
        %s355 = smul.addr %s354, 8
        %s356 = scalar_lea.vmem %s6, %s355
        %s357 = smul.u32 2, %s37
        %s358 = smul.u32 %s36, 2
        %s359 = sadd.s32 %s358, %s38
        %s360 = smul.u32 32, %s359
        %s361 = smul.u32 %s36, 2
        %s362 = sadd.s32 %s361, %s38
        %s363 = smul.u32 2, %s362
        %p364 = scmp.lt.s32.totalorder %s363, 7
        %s365 = scalar_select %p364, %s363, 7
        %s366 = scalar_lea.vmem %s3, %s365
        %s367 = smul.u32 %s36, 2
        %s368 = sadd.s32 %s367, %s38
        %s369 = smul.u32 2, %s368
        %s370 = smul.u32 2, %s37
        %p371 = scmp.lt.s32.totalorder %s370, 1
        %s372 = scalar_select %p371, %s370, 1
        %s373 = smul.addr %s372, 8
        %s374 = scalar_lea.vmem %s4, %s373
        %s375 = smul.u32 2, %s37
        %s376 = smul.u32 %s36, 2
        %s377 = sadd.s32 %s376, %s38
        %s378 = smul.u32 2, %s37
        %s379 = smul.u32 2, %s377
        %s380 = sadd.s32 %s36, %s37
        %s381 = smul.u32 2, %s380
        %p382 = scmp.lt.s32.totalorder %s381, 3
        %s383 = scalar_select %p382, %s381, 3
        %s384 = smul.addr %s383, 8
        %s385 = scalar_lea.vmem %s6, %s384
        %s386 = sadd.s32 %s36, %s37
        %s387 = smul.u32 2, %s386
        %p388 = scmp.eq.s32.totalorder %s38, 0
        // Predicated region
        $region45: #{tpu_custom_call.1} parent=35 // pred_check
          %p389 = pneg %p388
        $region46: #{tpu_custom_call.1} parent=35 // pred_check_branch
          %391 = sbr.rel (%p389) target = $region48
        $region47: #{tpu_custom_call.1} parent=35 // pred_region
          %v392 = vld [vmem:[#allocation5] sm:$0xff]
          %v393 = vld [vmem:[#allocation5 + $0x8] sm:$0xff]
          %v394 = vld [vmem:[#allocation5 + $0x10] sm:$0xff]
          %v395 = vld [vmem:[#allocation5 + $0x18] sm:$0xff]
          %v396 = vld [vmem:[#allocation5 + $0x20] sm:$0xff]
          %v397 = vld [vmem:[#allocation5 + $0x28] sm:$0xff]
          %v398 = vld [vmem:[#allocation5 + $0x30] sm:$0xff]
          %v399 = vld [vmem:[#allocation5 + $0x38] sm:$0xff]
          %v400 = vmul.f32 %v392, %v392
          %v401 = vmul.f32 %v393, %v393
          %v402 = vmul.f32 %v394, %v394
          %v403 = vmul.f32 %v395, %v395
          %v404 = vmul.f32 %v396, %v396
          %v405 = vmul.f32 %v397, %v397
          %v406 = vmul.f32 %v398, %v398
          %v407 = vmul.f32 %v399, %v399
          %v408 = vadd.f32 %v400, %v401
          %v409 = vadd.f32 %v408, %v402
          %v410 = vadd.f32 %v409, %v403
          %411 = vadd.xlane.f32.xlu0 %v410
          %v412 = vpop.xlane.xlu0 %411
          %v413 = vadd.f32 %v404, %v405
          %v414 = vadd.f32 %v413, %v406
          %v415 = vadd.f32 %v414, %v407
          %416 = vadd.xlane.f32.xlu0 %v415
          %v417 = vpop.xlane.xlu0 %416
          %v418 = vmax.f32 %v412, 1e-24
          %v419 = vmax.f32 %v417, 1e-24
          %v420 = vrsqrt.pop %v418
          %v421 = vrsqrt.pop %v419
          %v422 = vmul.f32 %v392, %v420
          %v423 = vmul.f32 %v393, %v420
          %v424 = vmul.f32 %v394, %v420
          %v425 = vmul.f32 %v395, %v420
          %v426 = vmul.f32 %v396, %v421
          %v427 = vmul.f32 %v397, %v421
          %v428 = vmul.f32 %v398, %v421
          %v429 = vmul.f32 %v399, %v421
          %v430 = vpack.c.bf16 %v426, %v422
          %v431 = vpack.c.bf16 %v427, %v423
          %v432 = vpack.c.bf16 %v428, %v424
          %v433 = vpack.c.bf16 %v429, %v425
          %434 = vst [vmem:[#allocation2] sm:$0xff] %v430
          %435 = vst [vmem:[#allocation2 + $0x8] sm:$0xff] %v431
          %436 = vst [vmem:[#allocation2 + $0x10] sm:$0xff] %v432
          %437 = vst [vmem:[#allocation2 + $0x18] sm:$0xff] %v433
          %vm438 = vcmask 7168
          %439 = vst.msk [vmem:[%s385] sm:$0xff] %vm438, 0.0
          %440 = vst.msk [vmem:[%s385 + $0x8] sm:$0xff] %vm438, 0.0
        $region48: #{tpu_custom_call.1} parent=35 // pred_fallthru
          _
        %v441 = vld [vmem:[%s313] sm:$0xff]
        %v442 = vld [vmem:[%s313 + $0x8] sm:$0xff]
        %v443 = vld [vmem:[%s313 + $0x10] sm:$0xff]
        %v444 = vld [vmem:[%s313 + $0x18] sm:$0xff]
        %v445 = vld [vmem:[%s313 + $0x20] sm:$0xff]
        %v446 = vld [vmem:[%s313 + $0x28] sm:$0xff]
        %v447 = vld [vmem:[%s313 + $0x30] sm:$0xff]
        %v448 = vld [vmem:[%s313 + $0x38] sm:$0xff]
        %v449 = vld [vmem:[%s313 + $0x40] sm:$0xff]
        %v450 = vld [vmem:[%s313 + $0x48] sm:$0xff]
        %v451 = vld [vmem:[%s313 + $0x50] sm:$0xff]
        %v452 = vld [vmem:[%s313 + $0x58] sm:$0xff]
        %v453 = vld [vmem:[%s313 + $0x60] sm:$0xff]
        %v454 = vld [vmem:[%s313 + $0x68] sm:$0xff]
        %v455 = vld [vmem:[%s313 + $0x70] sm:$0xff]
        %v456 = vld [vmem:[%s313 + $0x78] sm:$0xff]
        %v457 = vld [vmem:[%s313 + $0x80] sm:$0xff]
        %v458 = vld [vmem:[%s313 + $0x88] sm:$0xff]
        %v459 = vld [vmem:[%s313 + $0x90] sm:$0xff]
        %v460 = vld [vmem:[%s313 + $0x98] sm:$0xff]
        %v461 = vld [vmem:[%s313 + $0xa0] sm:$0xff]
        %v462 = vld [vmem:[%s313 + $0xa8] sm:$0xff]
        %v463 = vld [vmem:[%s313 + $0xb0] sm:$0xff]
        %v464 = vld [vmem:[%s313 + $0xb8] sm:$0xff]
        %v465 = vld [vmem:[%s313 + $0xc0] sm:$0xff]
        %v466 = vld [vmem:[%s313 + $0xc8] sm:$0xff]
        %v467 = vld [vmem:[%s313 + $0xd0] sm:$0xff]
        %v468 = vld [vmem:[%s313 + $0xd8] sm:$0xff]
        %v469 = vld [vmem:[%s313 + $0xe0] sm:$0xff]
        %v470 = vld [vmem:[%s313 + $0xe8] sm:$0xff]
        %v471 = vld [vmem:[%s313 + $0xf0] sm:$0xff]
        %v472 = vld [vmem:[%s313 + $0xf8] sm:$0xff]
        %v473 = vld [vmem:[%s313 + $0x100] sm:$0xff]
        %v474 = vld [vmem:[%s313 + $0x108] sm:$0xff]
        %v475 = vld [vmem:[%s313 + $0x110] sm:$0xff]
        %v476 = vld [vmem:[%s313 + $0x118] sm:$0xff]
        %v477 = vld [vmem:[%s313 + $0x120] sm:$0xff]
        %v478 = vld [vmem:[%s313 + $0x128] sm:$0xff]
        %v479 = vld [vmem:[%s313 + $0x130] sm:$0xff]
        %v480 = vld [vmem:[%s313 + $0x138] sm:$0xff]
        %v481 = vld [vmem:[%s313 + $0x140] sm:$0xff]
        %v482 = vld [vmem:[%s313 + $0x148] sm:$0xff]
        %v483 = vld [vmem:[%s313 + $0x150] sm:$0xff]
        %v484 = vld [vmem:[%s313 + $0x158] sm:$0xff]
        %v485 = vld [vmem:[%s313 + $0x160] sm:$0xff]
        %v486 = vld [vmem:[%s313 + $0x168] sm:$0xff]
        %v487 = vld [vmem:[%s313 + $0x170] sm:$0xff]
        %v488 = vld [vmem:[%s313 + $0x178] sm:$0xff]
        %v489 = vld [vmem:[%s313 + $0x180] sm:$0xff]
        %v490 = vld [vmem:[%s313 + $0x188] sm:$0xff]
        %v491 = vld [vmem:[%s313 + $0x190] sm:$0xff]
        %v492 = vld [vmem:[%s313 + $0x198] sm:$0xff]
        %v493 = vld [vmem:[%s313 + $0x1a0] sm:$0xff]
        %v494 = vld [vmem:[%s313 + $0x1a8] sm:$0xff]
        %v495 = vld [vmem:[%s313 + $0x1b0] sm:$0xff]
        %v496 = vld [vmem:[%s313 + $0x1b8] sm:$0xff]
        %v497 = vld [vmem:[%s313 + $0x1c0] sm:$0xff]
        %v498 = vld [vmem:[%s313 + $0x1c8] sm:$0xff]
        %v499 = vld [vmem:[%s313 + $0x1d0] sm:$0xff]
        %v500 = vld [vmem:[%s313 + $0x1d8] sm:$0xff]
        %v501 = vld [vmem:[%s313 + $0x1e0] sm:$0xff]
        %v502 = vld [vmem:[%s313 + $0x1e8] sm:$0xff]
        %v503 = vld [vmem:[%s313 + $0x1f0] sm:$0xff]
        %v504 = vld [vmem:[%s313 + $0x1f8] sm:$0xff]
        %v505 = vld [vmem:[#allocation2] sm:$0xff]
        %v506 = vld [vmem:[#allocation2 + $0x8] sm:$0xff]
        %v507 = vld [vmem:[#allocation2 + $0x10] sm:$0xff]
        %v508 = vld [vmem:[#allocation2 + $0x18] sm:$0xff]
        %v573 = vunpack.c.l.b16 %v441
        %v574 = vunpack.c.h.b16 %v441
        %v575 = vunpack.c.l.b16 %v442
        %v576 = vunpack.c.h.b16 %v442
        %v577 = vunpack.c.l.b16 %v443
        %v578 = vunpack.c.h.b16 %v443
        %v579 = vunpack.c.l.b16 %v444
        %v580 = vunpack.c.h.b16 %v444
        %v581 = vunpack.c.l.b16 %v445
        %v582 = vunpack.c.h.b16 %v445
        %v583 = vunpack.c.l.b16 %v446
        %v584 = vunpack.c.h.b16 %v446
        %v585 = vunpack.c.l.b16 %v447
        %v586 = vunpack.c.h.b16 %v447
        %v587 = vunpack.c.l.b16 %v448
        %v588 = vunpack.c.h.b16 %v448
        %v589 = vunpack.c.l.b16 %v449
        %v590 = vunpack.c.h.b16 %v449
        %v591 = vunpack.c.l.b16 %v450
        %v592 = vunpack.c.h.b16 %v450
        %v593 = vunpack.c.l.b16 %v451
        %v594 = vunpack.c.h.b16 %v451
        %v595 = vunpack.c.l.b16 %v452
        %v596 = vunpack.c.h.b16 %v452
        %v597 = vunpack.c.l.b16 %v453
        %v598 = vunpack.c.h.b16 %v453
        %v599 = vunpack.c.l.b16 %v454
        %v600 = vunpack.c.h.b16 %v454
        %v601 = vunpack.c.l.b16 %v455
        %v602 = vunpack.c.h.b16 %v455
        %v603 = vunpack.c.l.b16 %v456
        %v604 = vunpack.c.h.b16 %v456
        %v605 = vunpack.c.l.b16 %v457
        %v606 = vunpack.c.h.b16 %v457
        %v607 = vunpack.c.l.b16 %v458
        %v608 = vunpack.c.h.b16 %v458
        %v609 = vunpack.c.l.b16 %v459
        %v610 = vunpack.c.h.b16 %v459
        %v611 = vunpack.c.l.b16 %v460
        %v612 = vunpack.c.h.b16 %v460
        %v613 = vunpack.c.l.b16 %v461
        %v614 = vunpack.c.h.b16 %v461
        %v615 = vunpack.c.l.b16 %v462
        %v616 = vunpack.c.h.b16 %v462
        %v617 = vunpack.c.l.b16 %v463
        %v618 = vunpack.c.h.b16 %v463
        %v619 = vunpack.c.l.b16 %v464
        %v620 = vunpack.c.h.b16 %v464
        %v621 = vunpack.c.l.b16 %v465
        %v622 = vunpack.c.h.b16 %v465
        %v623 = vunpack.c.l.b16 %v466
        %v624 = vunpack.c.h.b16 %v466
        %v625 = vunpack.c.l.b16 %v467
        %v626 = vunpack.c.h.b16 %v467
        %v627 = vunpack.c.l.b16 %v468
        %v628 = vunpack.c.h.b16 %v468
        %v629 = vunpack.c.l.b16 %v469
        %v630 = vunpack.c.h.b16 %v469
        %v631 = vunpack.c.l.b16 %v470
        %v632 = vunpack.c.h.b16 %v470
        %v633 = vunpack.c.l.b16 %v471
        %v634 = vunpack.c.h.b16 %v471
        %v635 = vunpack.c.l.b16 %v472
        %v636 = vunpack.c.h.b16 %v472
        %v637 = vunpack.c.l.b16 %v473
        %v638 = vunpack.c.h.b16 %v473
        %v639 = vunpack.c.l.b16 %v474
        %v640 = vunpack.c.h.b16 %v474
        %v641 = vunpack.c.l.b16 %v475
        %v642 = vunpack.c.h.b16 %v475
        %v643 = vunpack.c.l.b16 %v476
        %v644 = vunpack.c.h.b16 %v476
        %v645 = vunpack.c.l.b16 %v477
        %v646 = vunpack.c.h.b16 %v477
        %v647 = vunpack.c.l.b16 %v478
        %v648 = vunpack.c.h.b16 %v478
        %v649 = vunpack.c.l.b16 %v479
        %v650 = vunpack.c.h.b16 %v479
        %v651 = vunpack.c.l.b16 %v480
        %v652 = vunpack.c.h.b16 %v480
        %v653 = vunpack.c.l.b16 %v481
        %v654 = vunpack.c.h.b16 %v481
        %v655 = vunpack.c.l.b16 %v482
        %v656 = vunpack.c.h.b16 %v482
        %v657 = vunpack.c.l.b16 %v483
        %v658 = vunpack.c.h.b16 %v483
        %v659 = vunpack.c.l.b16 %v484
        %v660 = vunpack.c.h.b16 %v484
        %v661 = vunpack.c.l.b16 %v485
        %v662 = vunpack.c.h.b16 %v485
        %v663 = vunpack.c.l.b16 %v486
        %v664 = vunpack.c.h.b16 %v486
        %v665 = vunpack.c.l.b16 %v487
        %v666 = vunpack.c.h.b16 %v487
        %v667 = vunpack.c.l.b16 %v488
        %v668 = vunpack.c.h.b16 %v488
        %v669 = vunpack.c.l.b16 %v489
        %v670 = vunpack.c.h.b16 %v489
        %v671 = vunpack.c.l.b16 %v490
        %v672 = vunpack.c.h.b16 %v490
        %v673 = vunpack.c.l.b16 %v491
        %v674 = vunpack.c.h.b16 %v491
        %v675 = vunpack.c.l.b16 %v492
        %v676 = vunpack.c.h.b16 %v492
        %v677 = vunpack.c.l.b16 %v493
        %v678 = vunpack.c.h.b16 %v493
        %v679 = vunpack.c.l.b16 %v494
        %v680 = vunpack.c.h.b16 %v494
        %v681 = vunpack.c.l.b16 %v495
        %v682 = vunpack.c.h.b16 %v495
        %v683 = vunpack.c.l.b16 %v496
        %v684 = vunpack.c.h.b16 %v496
        %v685 = vunpack.c.l.b16 %v497
        %v686 = vunpack.c.h.b16 %v497
        %v687 = vunpack.c.l.b16 %v498
        %v688 = vunpack.c.h.b16 %v498
        %v689 = vunpack.c.l.b16 %v499
        %v690 = vunpack.c.h.b16 %v499
        %v691 = vunpack.c.l.b16 %v500
        %v692 = vunpack.c.h.b16 %v500
        %v693 = vunpack.c.l.b16 %v501
        %v694 = vunpack.c.h.b16 %v501
        %v695 = vunpack.c.l.b16 %v502
        %v696 = vunpack.c.h.b16 %v502
        %v697 = vunpack.c.l.b16 %v503
        %v698 = vunpack.c.h.b16 %v503
        %v699 = vunpack.c.l.b16 %v504
        %v700 = vunpack.c.h.b16 %v504
        %v701 = vpack.c.b16 %v577, %v573
        %v702 = vpack.c.b16 %v578, %v574
        %v703 = vpack.c.b16 %v579, %v575
        %v704 = vpack.c.b16 %v580, %v576
        %v705 = vpack.c.b16 %v585, %v581
        %v706 = vpack.c.b16 %v586, %v582
        %v707 = vpack.c.b16 %v587, %v583
        %v708 = vpack.c.b16 %v588, %v584
        %v709 = vpack.c.b16 %v593, %v589
        %v710 = vpack.c.b16 %v594, %v590
        %v711 = vpack.c.b16 %v595, %v591
        %v712 = vpack.c.b16 %v596, %v592
        %v713 = vpack.c.b16 %v601, %v597
        %v714 = vpack.c.b16 %v602, %v598
        %v715 = vpack.c.b16 %v603, %v599
        %v716 = vpack.c.b16 %v604, %v600
        %v717 = vpack.c.b16 %v609, %v605
        %v718 = vpack.c.b16 %v610, %v606
        %v719 = vpack.c.b16 %v611, %v607
        %v720 = vpack.c.b16 %v612, %v608
        %v721 = vpack.c.b16 %v617, %v613
        %v722 = vpack.c.b16 %v618, %v614
        %v723 = vpack.c.b16 %v619, %v615
        %v724 = vpack.c.b16 %v620, %v616
        %v725 = vpack.c.b16 %v625, %v621
        %v726 = vpack.c.b16 %v626, %v622
        %v727 = vpack.c.b16 %v627, %v623
        %v728 = vpack.c.b16 %v628, %v624
        %v729 = vpack.c.b16 %v633, %v629
        %v730 = vpack.c.b16 %v634, %v630
        %v731 = vpack.c.b16 %v635, %v631
        %v732 = vpack.c.b16 %v636, %v632
        %v733 = vpack.c.b16 %v641, %v637
        %v734 = vpack.c.b16 %v642, %v638
        %v735 = vpack.c.b16 %v643, %v639
        %v736 = vpack.c.b16 %v644, %v640
        %v737 = vpack.c.b16 %v649, %v645
        %v738 = vpack.c.b16 %v650, %v646
        %v739 = vpack.c.b16 %v651, %v647
        %v740 = vpack.c.b16 %v652, %v648
        %v741 = vpack.c.b16 %v657, %v653
        %v742 = vpack.c.b16 %v658, %v654
        %v743 = vpack.c.b16 %v659, %v655
        %v744 = vpack.c.b16 %v660, %v656
        %v745 = vpack.c.b16 %v665, %v661
        %v746 = vpack.c.b16 %v666, %v662
        %v747 = vpack.c.b16 %v667, %v663
        %v748 = vpack.c.b16 %v668, %v664
        %v749 = vpack.c.b16 %v673, %v669
        %v750 = vpack.c.b16 %v674, %v670
        %v751 = vpack.c.b16 %v675, %v671
        %v752 = vpack.c.b16 %v676, %v672
        %v753 = vpack.c.b16 %v681, %v677
        %v754 = vpack.c.b16 %v682, %v678
        %v755 = vpack.c.b16 %v683, %v679
        %v756 = vpack.c.b16 %v684, %v680
        %v757 = vpack.c.b16 %v689, %v685
        %v758 = vpack.c.b16 %v690, %v686
        %v759 = vpack.c.b16 %v691, %v687
        %v760 = vpack.c.b16 %v692, %v688
        %v761 = vpack.c.b16 %v697, %v693
        %v762 = vpack.c.b16 %v698, %v694
        %v763 = vpack.c.b16 %v699, %v695
        %v764 = vpack.c.b16 %v700, %v696
        %829 = vmatprep.subr.bf16.mxu0 %v702
        %830 = vmatpush1.bf16.xpose.msra.mxu0 %v701
        %831 = vmatprep.subr.bf16.mxu0 %v706
        %832 = vmatpush1.bf16.xpose.msra.mxu0 %v705
        %833 = vmatprep.subr.bf16.mxu0 %v710
        %834 = vmatpush1.bf16.xpose.msra.mxu0 %v709
        %835 = vmatprep.subr.bf16.mxu0 %v714
        %836 = vmatpush1.bf16.xpose.msra.mxu0 %v713
        %837 = vmatprep.subr.bf16.mxu0 %v718
        %838 = vmatpush1.bf16.xpose.msra.mxu0 %v717
        %839 = vmatprep.subr.bf16.mxu0 %v722
        %840 = vmatpush1.bf16.xpose.msra.mxu0 %v721
        %841 = vmatprep.subr.bf16.mxu0 %v726
        %842 = vmatpush1.bf16.xpose.msra.mxu0 %v725
        %843 = vmatprep.subr.bf16.mxu0 %v730
        %844 = vmatpush1.bf16.xpose.msra.mxu0 %v729
        %845 = vmatprep.subr.bf16.mxu0 %v734
        %846 = vmatpush1.bf16.xpose.msra.mxu0 %v733
        %847 = vmatprep.subr.bf16.mxu0 %v738
        %848 = vmatpush1.bf16.xpose.msra.mxu0 %v737
        %849 = vmatprep.subr.bf16.mxu0 %v742
        %850 = vmatpush1.bf16.xpose.msra.mxu0 %v741
        %851 = vmatprep.subr.bf16.mxu0 %v746
        %852 = vmatpush1.bf16.xpose.msra.mxu0 %v745
        %853 = vmatprep.subr.bf16.mxu0 %v750
        %854 = vmatpush1.bf16.xpose.msra.mxu0 %v749
        %855 = vmatprep.subr.bf16.mxu0 %v754
        %856 = vmatpush1.bf16.xpose.msra.mxu0 %v753
        %857 = vmatprep.subr.bf16.mxu0 %v758
        %858 = vmatpush1.bf16.xpose.msra.mxu0 %v757
        %859 = vmatprep.subr.bf16.mxu0 %v762
        %860 = vmatpush1.bf16.xpose.msra.mxu0 %v761
        %861 = vmatprep.mubr.bf16.mxu0 %v506
        %862 = vmatmul.mubr.bf16.gmra.mrb[0].mxu0 %v505
        %v863 = vpop.f32.mrb[0].mxu0
        %v864 = vadd.f32 0.0, %v863
        %v865 = vpop.f32.mrb[0].mxu0
        %v866 = vadd.f32 0.0, %v865
        %v867 = vpop.f32.mrb[0].mxu0
        %v868 = vadd.f32 0.0, %v867
        %v869 = vpop.f32.mrb[0].mxu0
        %v870 = vadd.f32 0.0, %v869
        %871 = vdwg.mxu0
        %872 = vmatprep.subr.bf16.mxu0 %v704
        %873 = vmatpush1.bf16.xpose.msra.mxu0 %v703
        %874 = vmatprep.subr.bf16.mxu0 %v708
        %875 = vmatpush1.bf16.xpose.msra.mxu0 %v707
        %876 = vmatprep.subr.bf16.mxu0 %v712
        %877 = vmatpush1.bf16.xpose.msra.mxu0 %v711
        %878 = vmatprep.subr.bf16.mxu0 %v716
        %879 = vmatpush1.bf16.xpose.msra.mxu0 %v715
        %880 = vmatprep.subr.bf16.mxu0 %v720
        %881 = vmatpush1.bf16.xpose.msra.mxu0 %v719
        %882 = vmatprep.subr.bf16.mxu0 %v724
        %883 = vmatpush1.bf16.xpose.msra.mxu0 %v723
        %884 = vmatprep.subr.bf16.mxu0 %v728
        %885 = vmatpush1.bf16.xpose.msra.mxu0 %v727
        %886 = vmatprep.subr.bf16.mxu0 %v732
        %887 = vmatpush1.bf16.xpose.msra.mxu0 %v731
        %888 = vmatprep.subr.bf16.mxu0 %v736
        %889 = vmatpush1.bf16.xpose.msra.mxu0 %v735
        %890 = vmatprep.subr.bf16.mxu0 %v740
        %891 = vmatpush1.bf16.xpose.msra.mxu0 %v739
        %892 = vmatprep.subr.bf16.mxu0 %v744
        %893 = vmatpush1.bf16.xpose.msra.mxu0 %v743
        %894 = vmatprep.subr.bf16.mxu0 %v748
        %895 = vmatpush1.bf16.xpose.msra.mxu0 %v747
        %896 = vmatprep.subr.bf16.mxu0 %v752
        %897 = vmatpush1.bf16.xpose.msra.mxu0 %v751
        %898 = vmatprep.subr.bf16.mxu0 %v756
        %899 = vmatpush1.bf16.xpose.msra.mxu0 %v755
        %900 = vmatprep.subr.bf16.mxu0 %v760
        %901 = vmatpush1.bf16.xpose.msra.mxu0 %v759
        %902 = vmatprep.subr.bf16.mxu0 %v764
        %903 = vmatpush1.bf16.xpose.msra.mxu0 %v763
        %904 = vmatprep.mubr.bf16.mxu0 %v508
        %905 = vmatmul.mubr.bf16.gmra.mrb[0].mxu0 %v507
        %v906 = vpop.f32.mrb[0].mxu0
        %v907 = vadd.f32 %v864, %v906
        %v908 = vpop.f32.mrb[0].mxu0
        %v909 = vadd.f32 %v866, %v908
        %v910 = vpop.f32.mrb[0].mxu0
        %v911 = vadd.f32 %v868, %v910
        %v912 = vpop.f32.mrb[0].mxu0
        %v913 = vadd.f32 %v870, %v912
        %914 = vdwg.mxu0
        %v915 = vld [vmem:[%s366] sm:$0x3]
        %v917 = vlaneseq
        %v918 = vshrl.u32 %v917, 7
        %v919 = vsub.s32 0, %v918
        %v920 = vrot.slane %v915, %v919
        %v921 = vlaneseq
        %v922 = vshrl.u32 %v921, 7
        %v923 = vsub.s32 1, %v922
        %v924 = vrot.slane %v915, %v923
        %v927 = vmul.f32 %v907, %v920
        %v928 = vmul.f32 %v909, %v924
        %v929 = vmul.f32 %v911, %v920
        %v930 = vmul.f32 %v913, %v924
        %s931 = smul.u32 %s36, 2
        %s932 = sadd.s32 %s931, %s38
        %s933 = smul.u32 %s932, 256
        %v934 = vlaneseq
        %v935 = vand.u32 %v934, 127
        %v936 = vadd.s32 %v935, 128
        %v937 = vstv %s933
        %v938 = vadd.s32 %v937, %v935
        %v939 = vadd.s32 %v937, %v936
        %s940 = smul.u32 %s37, 4
        %s941 = sadd.s32 %s940, %s932
        %s942 = sld [smem:[#allocation4 + %s941]]
        %p943 = scmp.gt.s32.totalorder %s942, 0
        // Predicated region
        $region49: #{tpu_custom_call.1} parent=35 // pred_check
          %p944 = pneg %p943
        $region50: #{tpu_custom_call.1} parent=35 // pred_check_branch
          %946 = sbr.rel (%p944) target = $region52
        $region51: #{tpu_custom_call.1} parent=35 // pred_region
          %v947 = vmul.f32 %v927, %v927
          %v948 = vmul.f32 %v928, %v928
          %v949 = vmul.f32 %v929, %v929
          %v950 = vmul.f32 %v930, %v930
          %v951 = vsub.f32 1.0, %v947
          %v952 = vsub.f32 1.0, %v948
          %v953 = vsub.f32 1.0, %v949
          %v954 = vsub.f32 1.0, %v950
          %v955 = vmax.f32 %v951, 0.0
          %v956 = vmax.f32 %v952, 0.0
          %v957 = vmax.f32 %v953, 0.0
          %v958 = vmax.f32 %v954, 0.0
          %v959 = vrsqrt.pop %v955
          %v960 = vmul.f32 %v955, %v959
          %vm961 = vcmp.eq.f32.partialorder %v955, inf
          %v962 = vsel %vm961, %v955, %v960
          %vm963 = vcmp.eq.f32.partialorder %v955, 0.0
          %v964 = vand.u32 %v955, 2147483648
          %v965 = vsel %vm963, %v964, %v962
          %v966 = vrsqrt.pop %v956
          %v967 = vmul.f32 %v956, %v966
          %vm968 = vcmp.eq.f32.partialorder %v956, inf
          %v969 = vsel %vm968, %v956, %v967
          %vm970 = vcmp.eq.f32.partialorder %v956, 0.0
          %v971 = vand.u32 %v956, 2147483648
          %v972 = vsel %vm970, %v971, %v969
          %v973 = vrsqrt.pop %v957
          %v974 = vmul.f32 %v957, %v973
          %vm975 = vcmp.eq.f32.partialorder %v957, inf
          %v976 = vsel %vm975, %v957, %v974
          %vm977 = vcmp.eq.f32.partialorder %v957, 0.0
          %v978 = vand.u32 %v957, 2147483648
          %v979 = vsel %vm977, %v978, %v976
          %v980 = vrsqrt.pop %v958
          %v981 = vmul.f32 %v958, %v980
          %vm982 = vcmp.eq.f32.partialorder %v958, inf
          %v983 = vsel %vm982, %v958, %v981
          %vm984 = vcmp.eq.f32.partialorder %v958, 0.0
          %v985 = vand.u32 %v958, 2147483648
          %v986 = vsel %vm984, %v985, %v983
          %v987 = vmax.f32 %v965, 1e-07
          %v988 = vmax.f32 %v972, 1e-07
          %v989 = vmax.f32 %v979, 1e-07
          %v990 = vmax.f32 %v986, 1e-07
          %v991 = vmin.f32 %v987, 1.0
          %v992 = vmin.f32 %v988, 1.0
          %v993 = vmin.f32 %v989, 1.0
          %v994 = vmin.f32 %v990, 1.0
          %v995 = vmul.f32 %v927, 0.87758255
          %v996 = vmul.f32 %v928, 0.87758255
          %v997 = vmul.f32 %v929, 0.87758255
          %v998 = vmul.f32 %v930, 0.87758255
          %v999 = vmul.f32 %v991, 0.47942555
          %v1000 = vmul.f32 %v992, 0.47942555
          %v1001 = vmul.f32 %v993, 0.47942555
          %v1002 = vmul.f32 %v994, 0.47942555
          %v1003 = vsub.f32 %v995, %v999
          %v1004 = vsub.f32 %v996, %v1000
          %v1005 = vsub.f32 %v997, %v1001
          %v1006 = vsub.f32 %v998, %v1002
          %v1007 = vld [vmem:[%s374] sm:$0xff]
          %v1008 = vld [vmem:[%s374 + $0x8] sm:$0xff]
          %1009 = vset.pattern.permute.xlu0 0
          %1010 = vperm.xlu0 %1009, %v1007
          %v1011 = vpop.permute.xlu0 %1010
          %1012 = vset.pattern.permute.xlu0 0
          %1013 = vperm.xlu0 %1012, %v1008
          %v1014 = vpop.permute.xlu0 %1013
          %vm1015 = vcmp.eq.s32.totalorder %v938, %v1011
          %vm1016 = vcmp.eq.s32.totalorder %v939, %v1011
          %vm1017 = vcmp.eq.s32.totalorder %v938, %v1014
          %vm1018 = vcmp.eq.s32.totalorder %v939, %v1014
          %v1019 = vsel %vm1015, %v1003, %v927
          %v1020 = vsel %vm1016, %v1004, %v928
          %v1021 = vsel %vm1017, %v1005, %v929
          %v1022 = vsel %vm1018, %v1006, %v930
          %v1023 = vmul.f32 %v1019, 30.0
          %v1024 = vmul.f32 %v1020, 30.0
          %v1025 = vmul.f32 %v1021, 30.0
          %v1026 = vmul.f32 %v1022, 30.0
          %v1027 = vsub.f32 %v1023, 30.0
          %v1028 = vsub.f32 %v1024, 30.0
          %v1029 = vsub.f32 %v1025, 30.0
          %v1030 = vsub.f32 %v1026, 30.0
          %v1031 = vmul.f32 %v1027, 1.442695
          %v1032 = vpow.pop %v1031
          %v1033 = vmul.f32 %v1028, 1.442695
          %v1034 = vpow.pop %v1033
          %v1035 = vmul.f32 %v1029, 1.442695
          %v1036 = vpow.pop %v1035
          %v1037 = vmul.f32 %v1030, 1.442695
          %v1038 = vpow.pop %v1037
          %vm1039 = vcmp.lt.s32.totalorder %v938, 1000
          %vm1040 = vcmp.lt.s32.totalorder %v939, 1000
          %v1041 = vsel %vm1039, %v1032, 0.0
          %v1042 = vsel %vm1040, %v1034, 0.0
          %v1043 = vsel %vm1039, %v1036, 0.0
          %v1044 = vsel %vm1040, %v1038, 0.0
          %1045 = vst [vmem:[%s348] sm:$0xff] %v1041
          %1046 = vst [vmem:[%s348 + $0x8] sm:$0xff] %v1042
          %1047 = vst [vmem:[%s348 + $0x10] sm:$0xff] %v1043
          %1048 = vst [vmem:[%s348 + $0x18] sm:$0xff] %v1044
          %v1049 = vld [vmem:[%s385] sm:$0xff]
          %v1050 = vld [vmem:[%s385 + $0x8] sm:$0xff]
          %v1051 = vadd.f32 %v1041, %v1042
          %1052 = vadd.xlane.f32.xlu0 %v1051
          %v1053 = vpop.xlane.xlu0 %1052
          %v1054 = vadd.f32 %v1043, %v1044
          %1055 = vadd.xlane.f32.xlu0 %v1054
          %v1056 = vpop.xlane.xlu0 %1055
          %v1057 = vadd.f32 %v1049, %v1053
          %v1058 = vadd.f32 %v1050, %v1056
          %vm1059 = vcmask 7168
          %1060 = vst.msk [vmem:[%s385] sm:$0xff] %vm1059, %v1057
          %1061 = vst.msk [vmem:[%s385 + $0x8] sm:$0xff] %vm1059, %v1058
        $region52: #{tpu_custom_call.1} parent=35 // pred_fallthru
          _
        %p1062 = scmp.le.s32.totalorder %s942, 0
        // Predicated region
        $region53: #{tpu_custom_call.1} parent=35 // pred_check
          %p1063 = pneg %p1062
        $region54: #{tpu_custom_call.1} parent=35 // pred_check_branch
          %1065 = sbr.rel (%p1063) target = $region56
        $region55: #{tpu_custom_call.1} parent=35 // pred_region
          %v1066 = vmul.f32 %v927, 30.0
          %v1067 = vmul.f32 %v928, 30.0
          %v1068 = vmul.f32 %v929, 30.0
          %v1069 = vmul.f32 %v930, 30.0
          %v1070 = vsub.f32 %v1066, 30.0
          %v1071 = vsub.f32 %v1067, 30.0
          %v1072 = vsub.f32 %v1068, 30.0
          %v1073 = vsub.f32 %v1069, 30.0
          %v1074 = vmul.f32 %v1070, 1.442695
          %v1075 = vpow.pop %v1074
          %v1076 = vmul.f32 %v1071, 1.442695
          %v1077 = vpow.pop %v1076
          %v1078 = vmul.f32 %v1072, 1.442695
          %v1079 = vpow.pop %v1078
          %v1080 = vmul.f32 %v1073, 1.442695
          %v1081 = vpow.pop %v1080
          %vm1082 = vcmp.lt.s32.totalorder %v938, 1000
          %vm1083 = vcmp.lt.s32.totalorder %v939, 1000
          %v1084 = vsel %vm1082, %v1075, 0.0
          %v1085 = vsel %vm1083, %v1077, 0.0
          %v1086 = vsel %vm1082, %v1079, 0.0
          %v1087 = vsel %vm1083, %v1081, 0.0
          %1088 = vst [vmem:[%s348] sm:$0xff] %v1084
          %1089 = vst [vmem:[%s348 + $0x8] sm:$0xff] %v1085
          %1090 = vst [vmem:[%s348 + $0x10] sm:$0xff] %v1086
          %1091 = vst [vmem:[%s348 + $0x18] sm:$0xff] %v1087
          %v1092 = vld [vmem:[%s385] sm:$0xff]
          %v1093 = vld [vmem:[%s385 + $0x8] sm:$0xff]
          %v1094 = vadd.f32 %v1084, %v1085
          %1095 = vadd.xlane.f32.xlu0 %v1094
          %v1096 = vpop.xlane.xlu0 %1095
          %v1097 = vadd.f32 %v1086, %v1087
          %1098 = vadd.xlane.f32.xlu0 %v1097
          %v1099 = vpop.xlane.xlu0 %1098
          %v1100 = vadd.f32 %v1092, %v1096
          %v1101 = vadd.f32 %v1093, %v1099
          %vm1102 = vcmask 7168
          %1103 = vst.msk [vmem:[%s385] sm:$0xff] %vm1102, %v1100
          %1104 = vst.msk [vmem:[%s385 + $0x8] sm:$0xff] %vm1102, %v1101
        $region56: #{tpu_custom_call.1} parent=35 // pred_fallthru
          _
        %s1105 = sand.u32 %s176, 1
        %s1106 = scalar_lea.sflag [#allocation7], %s1105
        %s1107 = sand.u32 %s176, 1
        %s1108 = smul.addr %s1107, 32
        %s1109 = scalar_lea.vmem [#allocation10], %s1108
        %s1110 = sadd.s32 %s36, %s37
        %s1111 = smul.u32 2, %s1110
        %p1112 = scmp.lt.s32.totalorder %s1111, 3
        %s1113 = scalar_select %p1112, %s1111, 3
        %s1114 = smul.addr %s1113, 8
        %s1115 = scalar_lea.vmem %s6, %s1114
        // Predicated region
        $region57: #{tpu_custom_call.1} parent=35 // pred_check
          %p1116 = pneg %p186
        $region58: #{tpu_custom_call.1} parent=35 // pred_check_branch
          %1118 = sbr.rel (%p1116) target = $region60
        $region59: #{tpu_custom_call.1} parent=35 // pred_region
          %s1119 = smul.u32 %s36, 2
          %s1120 = sadd.s32 %s1119, %s38
          %s1121 = smul.u32 2, %s37
          %s1122 = smul.u32 2, %s1120
          %s1124 = ssub.s32 512, 512
          %1125 = vsyncadd %s1106, %s1124
          %s1126 = smul.addr %s1121, 8
          %s1127 = sadd.s32 %s1122, %s1126
          %s1128 = smul.addr %s1127, 128
          %s1129 = scalar_lea.hbm %s5, %s1128
          %s1130 = sshll.u32 %s1109, 4
          %s1131 = int_to_ptr.vmem [resolvable:$true] %s1130
          %1136 = dma.vmem_to_hbm [thread:$0]  %s1131, 512, %s1129, %s1106, 256, 1024, 16
        $region60: #{tpu_custom_call.1} parent=35 // pred_fallthru
          _
        // Predicated region
        $region61: #{tpu_custom_call.1} parent=35 // pred_check
          %p1137 = pneg %p214
        $region62: #{tpu_custom_call.1} parent=35 // pred_check_branch
          %1139 = sbr.rel (%p1137) target = $region64
        $region63: #{tpu_custom_call.1} parent=35 // pred_region
          %s1140 = sadd.s32 %s36, %s37
          %s1141 = smul.u32 2, %s1140
        $region64: #{tpu_custom_call.1} parent=35 // pred_fallthru
          _
      $region36: #{tpu_custom_call.1} parent=5 // pred_fallthru
        _
      %p1142 = scmp.le.s32.totalorder 2, %s26
      // Predicated region
      $region65: #{tpu_custom_call.1} parent=5 // pred_check
        %p1143 = pneg %p1142
      $region66: #{tpu_custom_call.1} parent=5 // pred_check_branch
        %1145 = sbr.rel (%p1143) target = $region68
      $region67: #{tpu_custom_call.1} parent=5 // pred_region
        %s1146 = ssub.s32 %s26, 2
        // Predicated region
        $region69: #{tpu_custom_call.1} parent=67 // pred_check
          %p1147 = pneg %p192
        $region70: #{tpu_custom_call.1} parent=67 // pred_check_branch
          %1149 = sbr.rel (%p1147) target = $region72
        $region71: #{tpu_custom_call.1} parent=67 // pred_region
          %s1150 = sand.u32 %s177, 1
          %s1151 = scalar_lea.sflag [#allocation7], %s1150
          %s1152 = sand.u32 %s177, 1
          %s1153 = smul.addr %s1152, 32
          %s1154 = scalar_lea.vmem [#allocation10], %s1153
          %1155 = dma.done %s1151, 512
        $region72: #{tpu_custom_call.1} parent=67 // pred_fallthru
          _
        // Predicated region
        $region73: #{tpu_custom_call.1} parent=67 // pred_check
          %p1156 = pneg %p220
        $region74: #{tpu_custom_call.1} parent=67 // pred_check_branch
          %1158 = sbr.rel (%p1156) target = $region76
        $region75: #{tpu_custom_call.1} parent=67 // pred_region
          %s1159 = sadd.s32 %s39, %s40
          %s1160 = smul.u32 2, %s1159
          %p1161 = scmp.lt.s32.totalorder %s1160, 3
          %s1162 = scalar_select %p1161, %s1160, 3
          %s1163 = smul.addr %s1162, 8
          %s1164 = scalar_lea.vmem %s6, %s1163
        $region76: #{tpu_custom_call.1} parent=67 // pred_fallthru
          _
      $region68: #{tpu_custom_call.1} parent=5 // pred_fallthru
        _
    $region6: #{tpu_custom_call.1} parent=1 // loop_footer
      %s30 = sadd.s32 1, %s26
    $region7: #{tpu_custom_call.1} parent=1 // loop_footer_branch
      %25 = sbr.rel target = $region3
    $region8: #{tpu_custom_call.1} parent=1 // loop_exit
      _
    %1165 = vsyncpa [#allocation6], 1
    %s1166 = scalar_lea.sflag [#allocation6], 1
    %1167 = vsyncpa %s1166, 1
    %1168 = vsyncpa [#allocation9], 1
    %s1169 = scalar_lea.sflag [#allocation9], 1
    %1170 = vsyncpa %s1169, 1
    %1171 = vsyncpa [#allocation7], 1
    %s1172 = scalar_lea.sflag [#allocation7], 1
    %1173 = vsyncpa %s1172, 1

</llo_original>
